<compile_context>
chip_gen: v6e
topology: v6e:2x2x1
jax: 0.10.0
libtpu: 0.0.40
codegen_flags: <defaults>
</compile_context>

<pallas_src>
import numpy as np
import jax
import jax.numpy as jnp
from jax.experimental import pallas as pl
from jax.experimental.pallas import tpu as pltpu


def _ceil_to(x, m):
    return ((x + m - 1) // m) * m


# ----------------------------------------------------------------------------
# Parameter construction (host numpy) — mirrors HiPPO.__init__ (method='legt')
# ----------------------------------------------------------------------------
def legt_transition(N):
    Q = np.arange(N, dtype=np.float64)
    R = (2 * Q + 1) ** 0.5
    j, i = np.meshgrid(Q, Q)                      # j[r,c] = c, i[r,c] = r
    A = R[:, None] * np.where(i < j, (-1.0) ** (i - j), 1.0) * R[None, :]
    B = R[:, None]
    return -A, B


def bilinear_discretize(A, B, dt):
    """scipy.signal.cont2discrete(..., method='bilinear') equivalent."""
    N = A.shape[0]
    I = np.eye(N, dtype=np.float64)
    ima = I - 0.5 * dt * A
    dA = np.linalg.solve(ima, I + 0.5 * dt * A)
    dB = np.linalg.solve(ima, dt * B)
    return dA, dB.squeeze(-1)


def make_hippo_params(N, dt=1.0, c=0.0):
    A, B = legt_transition(N)
    A = A + np.eye(N) * c
    dA, dB = bilinear_discretize(A, B, dt)
    return dA.astype(np.float32), dB.astype(np.float32)


# ----------------------------------------------------------------------------
# Chunked-scan weight tables (host numpy; f64 accumulation of the f32 params).
#
# For a chunk of TL steps with carry c0 (rows = batch) and per-step scalars
# x_0..x_{TL-1}, with the fused state row  s = [x_0..x_{TL-1}, c0]  (len TL+N):
#   slab = s @ Wfull,   slab[:, k*N:(k+1)*N] = c_k
#   Wfull[j      , k*N:(k+1)*N] = (dA^(k-j) dB)^T     for j <= k   (input rows)
#   Wfull[TL + : , k*N:(k+1)*N] = (dA^(k+1))^T                     (carry rows)
#   Cmat = Wfull[:, (TL-1)*N : TL*N]   -> next-chunk carry c_{TL-1}
# ----------------------------------------------------------------------------
def make_chunk_mats(dA_f32, dB_f32, TL):
    dA = np.asarray(dA_f32, dtype=np.float64)
    dB = np.asarray(dB_f32, dtype=np.float64)
    N = dA.shape[0]
    powers = [np.eye(N, dtype=np.float64)]
    for _ in range(TL):
        powers.append(powers[-1] @ dA)
    pdB = np.stack([powers[p] @ dB for p in range(TL)], axis=0)    # (TL, N)
    Wfull = np.zeros((TL + N, TL * N), dtype=np.float64)
    for k in range(TL):
        Wfull[TL:, k * N:(k + 1) * N] = powers[k + 1].T            # carry rows
        for j in range(k + 1):
            Wfull[j, k * N:(k + 1) * N] = pdB[k - j]               # input rows
    Cmat = Wfull[:, (TL - 1) * N: TL * N].copy()
    return Wfull.astype(np.float32), Cmat.astype(np.float32)


# ----------------------------------------------------------------------------
# Pallas kernel: one chunk of TL timesteps = one fused MXU contraction
# ----------------------------------------------------------------------------
def hippo_chunk_kernel(x_ref, w_ref, cm_ref, o_ref, st_ref):
    # x_ref  : (1, TB, TL)      scalar inputs of this chunk, batch-major
    # w_ref  : (TL+N, TL*N)     fused weight table [Wmat ; Pmat]
    # cm_ref : (TL+N, N)        carry-extraction columns (last step of Wfull)
    # o_ref  : (TB, TL*N)       lane-dense output slab (t-major, n-minor)
    # st_ref : (TB, TL+N)       VMEM scratch state: [:, :TL]=x, [:, TL:]=carry
    tl = x_ref.shape[-1]

    @pl.when(pl.program_id(1) == 0)          # time axis: inner, sequential
    def _():
        st_ref[...] = jnp.zeros_like(st_ref)

    st_ref[:, :tl] = x_ref[0]                # drop current chunk's inputs in
    state = st_ref[...]
    # small dedicated dot for the next-chunk carry (short serial dependency)
    carry_next = jnp.dot(state, cm_ref[...], preferred_element_type=jnp.float32)
    # single fused MXU contraction over K = TL+N  ->  (TB, TL*N) output slab
    o_ref[...] = jnp.dot(state, w_ref[...],
                         preferred_element_type=jnp.float32).astype(o_ref.dtype)
    st_ref[:, tl:] = carry_next


# ----------------------------------------------------------------------------
# Tiling heuristics
# ----------------------------------------------------------------------------
def _pick_tiles(L, B, N):
    # TL must be a multiple of 8 and TL*N a multiple of 128 (lane-dense slab).
    tl_step = int(np.lcm(8, 128 // int(np.gcd(N, 128))))

    # MXU contraction depth per generation (128 on v2-v5, 256 on v6e/v7x).
    try:
        kind = jax.devices()[0].device_kind.lower()
    except Exception:
        kind = ""
    mxu_k = 128 if any(v in kind for v in ("v2", "v3", "v4", "v5")) else 256
    tl_target = max(tl_step, ((mxu_k - N) // tl_step) * tl_step)

    # Batch tiling: multiple-of-8 tiles, >=2 blocks when B_pad >= 16 (v7x
    # megacore), without blindly padding tiny batches (writeback-bound kernel).
    B_pad = _ceil_to(B, 8)
    if B_pad <= 8:
        TB = B_pad
    elif B_pad <= 256:
        B_pad = _ceil_to(B_pad, 16)
        TB = B_pad // 2
    else:
        B_pad = _ceil_to(B_pad, 64)
        TB = 128 if B_pad % 128 == 0 else 64
    NB = B_pad // TB

    TL = min(tl_target, _ceil_to(L, tl_step))

    # Keep the (double-buffered) VMEM footprint under a v7x-safe budget.
    def footprint(tl):
        K, W = tl + N, tl * N
        return 4 * (2 * TB * tl      # x (2 buffers)
                    + 2 * K * W      # Wfull (2 buffers; constant block)
                    + 2 * K * N      # Cmat
                    + 2 * TB * W     # output slab (2 buffers)
                    + TB * K)        # state scratch

    budget = 40 << 20
    while TL > tl_step and footprint(TL) > budget:
        TL -= tl_step

    L_pad = _ceil_to(L, TL)
    return TL, L_pad, B_pad, TB, NB, footprint(TL)


# ----------------------------------------------------------------------------
# Wrapper
# ----------------------------------------------------------------------------
def hippo_forward(inputs, dA_np, dB_np, *, batch_major=False):
    """
    inputs : (L, B) float32
    dA_np  : (N, N) float32 (numpy), dB_np : (N,) float32 (numpy)
    returns: (L, B, N) float32, or (B, L, N) if batch_major=True (no extra
             transpose pass; the kernel output is natively batch-major).
    """
    inputs = jnp.asarray(inputs, dtype=jnp.float32)
    L, B = inputs.shape
    dA_np = np.asarray(dA_np, dtype=np.float32)
    dB_np = np.asarray(dB_np, dtype=np.float32)
    N = dA_np.shape[0]

    TL, L_pad, B_pad, TB, NB, vmem_need = _pick_tiles(L, B, N)
    G = L_pad // TL
    K = TL + N

    Wfull, Cmat = make_chunk_mats(dA_np, dB_np, TL)
    Wfull = jnp.asarray(Wfull)                       # (K, TL*N)
    Cmat = jnp.asarray(Cmat)                         # (K, N)

    # Input layout plumbing (tiny vs. the output): (L,B) -> (G, B_pad, TL).
    x = jnp.pad(inputs, ((0, L_pad - L), (0, B_pad - B)))
    x = x.reshape(G, TL, B_pad).transpose(0, 2, 1)

    grid_spec = pltpu.PrefetchScalarGridSpec(
        num_scalar_prefetch=0,
        grid=(NB, G),                                # (batch parallel, time sequential)
        in_specs=[
            pl.BlockSpec((1, TB, TL), lambda bi, ti: (ti, bi, 0)),
            pl.BlockSpec((K, TL * N), lambda bi, ti: (0, 0)),
            pl.BlockSpec((K, N), lambda bi, ti: (0, 0)),
        ],
        out_specs=pl.BlockSpec((TB, TL * N), lambda bi, ti: (bi, ti)),
        scratch_shapes=[pltpu.VMEM((TB, K), jnp.float32)],
    )

    cost = pl.CostEstimate(
        flops=int(2 * B_pad * G * K * (TL * N + N)),
        transcendentals=0,
        bytes_accessed=int(4 * (B_pad * L_pad * N        # output slab
                                + B_pad * L_pad          # inputs
                                + K * TL * N + K * N)),  # weight tables
    )

    out2d = pl.pallas_call(
        hippo_chunk_kernel,
        out_shape=jax.ShapeDtypeStruct((B_pad, G * TL * N), jnp.float32),
        grid_spec=grid_spec,
        compiler_params=pltpu.CompilerParams(
            dimension_semantics=("parallel", "arbitrary"),
            vmem_limit_bytes=int(min(max(vmem_need + (8 << 20), 32 << 20), 60 << 20)),
        ),
        cost_estimate=cost,
    )(x, Wfull, Cmat)

    # (B_pad, G*TL*N) -> (B_pad, L_pad, N) is a free view; slice off padding.
    out = out2d.reshape(B_pad, L_pad, N)[:B, :L, :]
    if batch_major:
        return out                                   # (B, L, N)
    return jnp.transpose(out, (1, 0, 2))             # (L, B, N) module semantics


# ----------------------------------------------------------------------------
# Pure-numpy sequential reference (the recurrence HiPPO.forward computes)
# ----------------------------------------------------------------------------
def hippo_forward_ref(inputs, dA, dB):
    L, B = inputs.shape
    u = inputs[..., None].astype(np.float32) * dB[None, None, :]
    c = np.zeros((B, dA.shape[0]), dtype=np.float32)
    outs = []
    for t in range(L):
        c = c @ dA.T + u[t]
        outs.append(c.copy())
    return np.stack(outs, axis=0)


if __name__ == "__main__":
    key = jax.random.PRNGKey(0)
    k1, k2, k3 = jax.random.split(key, 3)

    # --- small shape consistent with the module defaults ----------------------
    N, L, B = 32, 8, 2
    dA, dB = make_hippo_params(N, dt=1.0 / L, c=0.0)
    inputs = jax.random.normal(k1, (L, B), dtype=jnp.float32)
    out = jax.block_until_ready(hippo_forward(inputs, dA, dB))
    ref = hippo_forward_ref(np.asarray(inputs), dA, dB)
    assert out.shape == (L, B, N)
    np.testing.assert_allclose(np.asarray(out), ref, rtol=5e-3, atol=5e-3)

    # --- longer sequence: exercises L padding and a large single chunk --------
    N2, L2, B2 = 32, 100, 3
    dA2, dB2 = make_hippo_params(N2, dt=1.0 / L2, c=0.0)
    inputs2 = jax.random.normal(k2, (L2, B2), dtype=jnp.float32)
    out2 = jax.block_until_ready(hippo_forward(inputs2, dA2, dB2))
    ref2 = hippo_forward_ref(np.asarray(inputs2), dA2, dB2)
    assert out2.shape == (L2, B2, N2)
    np.testing.assert_allclose(np.asarray(out2), ref2, rtol=5e-3, atol=5e-3)

    # --- multi-chunk carry + >=2 batch blocks (megacore path), batch-major ----
    # (looser tolerance: chunk-level reassociation of a 300-step recurrence)
    N3, L3, B3 = 32, 300, 20
    dA3, dB3 = make_hippo_params(N3, dt=1.0 / L3, c=0.0)
    inputs3 = jax.random.normal(k3, (L3, B3), dtype=jnp.float32)
    out3 = jax.block_until_ready(hippo_forward(inputs3, dA3, dB3, batch_major=True))
    ref3 = hippo_forward_ref(np.asarray(inputs3), dA3, dB3)
    assert out3.shape == (B3, L3, N3)
    np.testing.assert_allclose(np.asarray(out3).transpose(1, 0, 2), ref3,
                               rtol=1e-2, atol=1e-2)

    # TODO(synk): `reconstruct` / `basis` (scipy Legendre eval_matrix @ c) is
    # host-side analysis code, not part of the forward hot path; omitted.
    print("KERNEL_OK")
</pallas_src>

<mosaic_0001>
module attributes {stable_mosaic.version = 11 : i64} {
  func.func @hippo_chunk_kernel(%arg0: i32, %arg1: i32, %arg2: memref<1x8x8xf32, #tpu.memory_space<vmem>>, %arg3: memref<40x256xf32, #tpu.memory_space<vmem>>, %arg4: memref<40x32xf32, #tpu.memory_space<vmem>>, %arg5: memref<8x256xf32, #tpu.memory_space<vmem>>, %arg6: memref<8x40xf32, #tpu.memory_space<vmem>>) attributes {dimension_semantics = [#tpu.dimension_semantics<parallel>, #tpu.dimension_semantics<arbitrary>], iteration_bounds = array<i64: 1, 1>, scalar_prefetch = 0 : i64, scratch_operands = 1 : i64, tpu.core_type = #tpu.core_type<tc>, window_params = [{transform_indices = @transform_0, window_bounds = array<i64: 1, 8, 8>}, {pipeline_mode = #tpu.pipeline_mode<synchronous>, transform_indices = @transform_1, window_bounds = array<i64: 40, 256>}, {pipeline_mode = #tpu.pipeline_mode<synchronous>, transform_indices = @transform_2, window_bounds = array<i64: 40, 32>}, {transform_indices = @transform_3, window_bounds = array<i64: 8, 256>}]} {
    %c0_i32 = arith.constant 0 : i32
    %0 = arith.cmpi eq, %arg1, %c0_i32 : i32
    %1 = arith.extui %0 : i1 to i32
    %c0_i32_0 = arith.constant 0 : i32
    %2 = arith.cmpi ne, %1, %c0_i32_0 : i32
    scf.if %2 {
      %cst_15 = arith.constant 0.000000e+00 : f32
      %13 = vector.broadcast %cst_15 : f32 to vector<8x40xf32>
      %c0_16 = arith.constant 0 : index
      %c0_17 = arith.constant 0 : index
      %14 = vector.load %arg6[%c0_16, %c0_17] : memref<8x40xf32, #tpu.memory_space<vmem>>, vector<8x40xf32>
      tpu.vector_store %arg6[%c0_16, %c0_17], %13 {strides = array<i32>} : memref<8x40xf32, #tpu.memory_space<vmem>>, vector<8x40xf32>,
    } else {
    }
    %c0 = arith.constant 0 : index
    %c0_1 = arith.constant 0 : index
    %c0_2 = arith.constant 0 : index
    %3 = vector.load %arg2[%c0, %c0_1, %c0_2] : memref<1x8x8xf32, #tpu.memory_space<vmem>>, vector<1x8x8xf32>
    %4 = vector.shape_cast %3 : vector<1x8x8xf32> to vector<8x8xf32>
    %c0_3 = arith.constant 0 : index
    %c0_4 = arith.constant 0 : index
    %5 = vector.load %arg6[%c0_3, %c0_4] : memref<8x40xf32, #tpu.memory_space<vmem>>, vector<8x8xf32>
    tpu.vector_store %arg6[%c0_3, %c0_4], %4 {strides = array<i32>} : memref<8x40xf32, #tpu.memory_space<vmem>>, vector<8x8xf32>,
    %c0_5 = arith.constant 0 : index
    %c0_6 = arith.constant 0 : index
    %6 = vector.load %arg6[%c0_5, %c0_6] : memref<8x40xf32, #tpu.memory_space<vmem>>, vector<8x40xf32>
    %c0_7 = arith.constant 0 : index
    %c0_8 = arith.constant 0 : index
    %7 = vector.load %arg4[%c0_7, %c0_8] : memref<40x32xf32, #tpu.memory_space<vmem>>, vector<40x32xf32>
    %cst = arith.constant dense<0.000000e+00> : vector<8x32xf32>
    %8 = tpu.matmul %6, %7, %cst {dimension_numbers = #tpu.dot_dimension_numbers<[1], [0], [0], [1], [0, 0, 1, 1], [], []>} : vector<8x40xf32>, vector<40x32xf32>, vector<8x32xf32> -> vector<8x32xf32>
    %c0_9 = arith.constant 0 : index
    %c0_10 = arith.constant 0 : index
    %9 = vector.load %arg3[%c0_9, %c0_10] : memref<40x256xf32, #tpu.memory_space<vmem>>, vector<40x256xf32>
    %cst_11 = arith.constant dense<0.000000e+00> : vector<8x256xf32>
    %10 = tpu.matmul %6, %9, %cst_11 {dimension_numbers = #tpu.dot_dimension_numbers<[1], [0], [0], [1], [0, 0, 1, 1], [], []>} : vector<8x40xf32>, vector<40x256xf32>, vector<8x256xf32> -> vector<8x256xf32>
    %c0_12 = arith.constant 0 : index
    %c0_13 = arith.constant 0 : index
    %11 = vector.load %arg5[%c0_12, %c0_13] : memref<8x256xf32, #tpu.memory_space<vmem>>, vector<8x256xf32>
    tpu.vector_store %arg5[%c0_12, %c0_13], %10 {strides = array<i32>} : memref<8x256xf32, #tpu.memory_space<vmem>>, vector<8x256xf32>,
    %c0_14 = arith.constant 0 : index
    %c8 = arith.constant 8 : index
    %12 = vector.load %arg6[%c0_14, %c8] : memref<8x40xf32, #tpu.memory_space<vmem>>, vector<8x32xf32>
    tpu.vector_store %arg6[%c0_14, %c8], %8 {strides = array<i32>} : memref<8x40xf32, #tpu.memory_space<vmem>>, vector<8x32xf32>,
    return
  }
  func.func @transform_0(%arg0: i32, %arg1: i32) -> (i32, i32, i32) {
    %c0_i32 = arith.constant 0 : i32
    %c0_i32_0 = arith.constant 0 : i32
    return %arg1, %arg0, %c0_i32 : i32, i32, i32
  }
  func.func @transform_1(%arg0: i32, %arg1: i32) -> (i32, i32) {
    %c0_i32 = arith.constant 0 : i32
    %c0_i32_0 = arith.constant 0 : i32
    %c0_i32_1 = arith.constant 0 : i32
    return %c0_i32, %c0_i32_0 : i32, i32
  }
  func.func @transform_2(%arg0: i32, %arg1: i32) -> (i32, i32) {
    %c0_i32 = arith.constant 0 : i32
    %c0_i32_0 = arith.constant 0 : i32
    %c0_i32_1 = arith.constant 0 : i32
    return %c0_i32, %c0_i32_0 : i32, i32
  }
  func.func @transform_3(%arg0: i32, %arg1: i32) -> (i32, i32) {
    %c0_i32 = arith.constant 0 : i32
    return %arg0, %arg1 : i32, i32
  }
}

</mosaic_0001>

<llo_original>
// kernel: tpu_custom_call.1
$region0: #{tpu_custom_call.1}
  #allocation0 [shape = 'u32[]', space=smem, size = 0x4, offset = 0x4, fixed_abs, tag = 'smem constant byte address 0x4 - core index']
  #allocation1 [shape = 'u32[144,128]{1,0:T(1,128)}', space=vmem, size = 0x12000, scoped, tag = 'internal scratch']
  #allocation2 [shape = 'f32[8,40]{1,0:T(8,128)}', space=vmem, size = 0x1000, scoped, tag = 'scratch operand']
  %s0 = inlined_call_operand.vmem [shape: f32[1,8,8], index: 0, kind: input, shape index: {}]
  %s1 = inlined_call_operand.hbm [shape: f32[40,256], index: 1, kind: input, shape index: {}]
  %s2 = inlined_call_operand.vmem [shape: f32[40,32], index: 2, kind: input, shape index: {}]
  %s3 = inlined_call_operand.hbm [shape: f32[8,256], index: 3, kind: output, shape index: {}]
  %s4 = sld [smem:[#allocation0]]
  $region30: #{tpu_custom_call.1} parent=0
    _
  %s6 = ssub.s32 1, %s4
  %s7 = scalar_select 0, %s6, %s4
  $region1: #{tpu_custom_call.1} parent=0
    #allocation3 [shape = 'u8[40960]{0}', space=vmem, size = 0xa000, scoped, tag = 'input window, operand 1, single buffered']
    #allocation4 [shape = 's32[1]{0}', space=sflag, size = 0x4, scoped, tag = 'scoped memory for tpu_custom_call.1']
    #allocation5 [shape = 's32[1]{0}', space=sflag, size = 0x4, scoped, tag = 'scoped memory for tpu_custom_call.1']
    #allocation6 [shape = 'u8[8192]{0}', space=vmem, size = 0x2000, scoped, tag = 'output window, operand 0, single buffered']
    %8 = vsyncpa [#allocation4], 0
    %9 = vsyncpa [#allocation5], 0
    // Predicated region
    $region2: #{tpu_custom_call.1} parent=1 // pred_check
      _
    $region3: #{tpu_custom_call.1} parent=1 // pred_check_branch
      %11 = sbr.rel (0) target = $region5
    $region4: #{tpu_custom_call.1} parent=1 // pred_region
      _
    $region5: #{tpu_custom_call.1} parent=1 // pred_fallthru
      _
    // Predicated region
    $region6: #{tpu_custom_call.1} parent=1 // pred_check
      _
    $region7: #{tpu_custom_call.1} parent=1 // pred_check_branch
      %13 = sbr.rel (0) target = $region9
    $region8: #{tpu_custom_call.1} parent=1 // pred_region
      %s15 = ssub.s32 1280, 1280
      %16 = vsyncadd [#allocation4], %s15
      %s17 = sshll.u32 [#allocation3], 4
      %s18 = int_to_ptr.vmem [resolvable:$true] %s17
      %23 = dma.hbm_to_vmem [thread:$0]  %s1, 1280, %s18, [#allocation4], 256, 256, 16
    $region9: #{tpu_custom_call.1} parent=1 // pred_fallthru
      _
    // Predicated region
    $region10: #{tpu_custom_call.1} parent=1 // pred_check
      _
    $region11: #{tpu_custom_call.1} parent=1 // pred_check_branch
      %25 = sbr.rel (0) target = $region13
    $region12: #{tpu_custom_call.1} parent=1 // pred_region
      _
    $region13: #{tpu_custom_call.1} parent=1 // pred_fallthru
      _
    // Predicated region
    $region14: #{tpu_custom_call.1} parent=1 // pred_check
      _
    $region15: #{tpu_custom_call.1} parent=1 // pred_check_branch
      %27 = sbr.rel (0) target = $region17
    $region16: #{tpu_custom_call.1} parent=1 // pred_region
      %28 = dma.done [#allocation4], 1280
    $region17: #{tpu_custom_call.1} parent=1 // pred_fallthru
      _
    %p29 = scmp.eq.s32.totalorder 0, 0
    // Predicated region
    $region18: #{tpu_custom_call.1} parent=1 // pred_check
      %p30 = pneg %p29
    $region19: #{tpu_custom_call.1} parent=1 // pred_check_branch
      %32 = sbr.rel (%p30) target = $region21
    $region20: #{tpu_custom_call.1} parent=1 // pred_region
      %vm33 = vcmask 326656
      %34 = vst.msk [vmem:[#allocation2] sm:$0xff] %vm33, 0.0
    $region21: #{tpu_custom_call.1} parent=1 // pred_fallthru
      _
    %v35 = vld [vmem:[%s0] sm:$0xff]
    %vm36 = vcmask 64512
    %37 = vst.msk [vmem:[#allocation2] sm:$0xff] %vm36, %v35
    %v38 = vld [vmem:[#allocation2] sm:$0xff]
    %v39 = vld [vmem:[%s2] sm:$0xff]
    %v40 = vld [vmem:[%s2 + $0x8] sm:$0xff]
    %v41 = vld [vmem:[%s2 + $0x10] sm:$0xff]
    %v42 = vld [vmem:[%s2 + $0x18] sm:$0xff]
    %v43 = vld [vmem:[%s2 + $0x20] sm:$0xff]
    %vm44 = vcmask 326656
    %v46 = vsel %vm44, %v38, 0
    %48 = vmatprep.subr.mxu0 0.0
    %49 = vmatpush1.msra.mxu0 0.0
    %50 = vmatprep.subr.mxu0 0.0
    %51 = vmatpush1.msra.mxu0 0.0
    %52 = vmatprep.subr.mxu0 0.0
    %53 = vmatpush1.msra.mxu0 0.0
    %54 = vmatprep.subr.mxu0 0.0
    %55 = vmatpush1.msra.mxu0 0.0
    %56 = vmatprep.subr.mxu0 0.0
    %57 = vmatpush1.msra.mxu0 0.0
    %58 = vmatprep.subr.mxu0 0.0
    %59 = vmatpush1.msra.mxu0 0.0
    %60 = vmatprep.subr.mxu0 0.0
    %61 = vmatpush1.msra.mxu0 0.0
    %62 = vmatprep.subr.mxu0 0.0
    %63 = vmatpush1.msra.mxu0 0.0
    %64 = vmatprep.subr.mxu0 0.0
    %65 = vmatpush1.msra.mxu0 0.0
    %66 = vmatprep.subr.mxu0 0.0
    %67 = vmatpush1.msra.mxu0 0.0
    %68 = vmatprep.subr.mxu0 0.0
    %69 = vmatpush1.msra.mxu0 0.0
    %70 = vmatprep.subr.mxu0 0.0
    %71 = vmatpush1.msra.mxu0 %v43
    %72 = vmatprep.subr.mxu0 0.0
    %73 = vmatpush1.msra.mxu0 %v42
    %74 = vmatprep.subr.mxu0 0.0
    %75 = vmatpush1.msra.mxu0 %v41
    %76 = vmatprep.subr.mxu0 0.0
    %77 = vmatpush1.msra.mxu0 %v40
    %78 = vmatprep.subr.mxu0 0.0
    %79 = vmatpush1.msra.mxu0 %v39
    %80 = vmatprep.subr.mxu0 0.0
    %81 = vmatpush2.msra.mxu0 0.0
    %82 = vmatprep.subr.mxu0 0.0
    %83 = vmatpush2.msra.mxu0 0.0
    %84 = vmatprep.subr.mxu0 0.0
    %85 = vmatpush2.msra.mxu0 0.0
    %86 = vmatprep.subr.mxu0 0.0
    %87 = vmatpush2.msra.mxu0 0.0
    %88 = vmatprep.subr.mxu0 0.0
    %89 = vmatpush2.msra.mxu0 0.0
    %90 = vmatprep.subr.mxu0 0.0
    %91 = vmatpush2.msra.mxu0 0.0
    %92 = vmatprep.subr.mxu0 0.0
    %93 = vmatpush2.msra.mxu0 0.0
    %94 = vmatprep.subr.mxu0 0.0
    %95 = vmatpush2.msra.mxu0 0.0
    %96 = vmatprep.subr.mxu0 0.0
    %97 = vmatpush2.msra.mxu0 0.0
    %98 = vmatprep.subr.mxu0 0.0
    %99 = vmatpush2.msra.mxu0 0.0
    %100 = vmatprep.subr.mxu0 0.0
    %101 = vmatpush2.msra.mxu0 0.0
    %102 = vmatprep.subr.mxu0 0.0
    %103 = vmatpush2.msra.mxu0 0.0
    %104 = vmatprep.subr.mxu0 0.0
    %105 = vmatpush2.msra.mxu0 0.0
    %106 = vmatprep.subr.mxu0 0.0
    %107 = vmatpush2.msra.mxu0 0.0
    %108 = vmatprep.subr.mxu0 0.0
    %109 = vmatpush2.msra.mxu0 0.0
    %110 = vmatprep.subr.mxu0 0.0
    %111 = vmatpush2.msra.mxu0 0.0
    %112 = vmatprep.mubr.f32.mxu0 0.0
    %113 = vmatmul.mubr.f32.gmra.mxu0 %v46
    %v114 = vpop.f32.mrf.mxu0
    %v115 = vadd.f32 0.0, %v114
    %v116 = vpop.f32.mrf.mxu0
    %117 = vdwg.mxu0
    %v118 = vld [vmem:[#allocation3] sm:$0xff]
    %v119 = vld [vmem:[#allocation3 + $0x8] sm:$0xff]
    %v120 = vld [vmem:[#allocation3 + $0x10] sm:$0xff]
    %v121 = vld [vmem:[#allocation3 + $0x18] sm:$0xff]
    %v122 = vld [vmem:[#allocation3 + $0x20] sm:$0xff]
    %v123 = vld [vmem:[#allocation3 + $0x28] sm:$0xff]
    %v124 = vld [vmem:[#allocation3 + $0x30] sm:$0xff]
    %v125 = vld [vmem:[#allocation3 + $0x38] sm:$0xff]
    %v126 = vld [vmem:[#allocation3 + $0x40] sm:$0xff]
    %v127 = vld [vmem:[#allocation3 + $0x48] sm:$0xff]
    %128 = vmatprep.subr.mxu0 0.0
    %129 = vmatpush1.msra.mxu0 0.0
    %130 = vmatprep.subr.mxu0 0.0
    %131 = vmatpush1.msra.mxu0 0.0
    %132 = vmatprep.subr.mxu0 0.0
    %133 = vmatpush1.msra.mxu0 0.0
    %134 = vmatprep.subr.mxu0 0.0
    %135 = vmatpush1.msra.mxu0 0.0
    %136 = vmatprep.subr.mxu0 0.0
    %137 = vmatpush1.msra.mxu0 0.0
    %138 = vmatprep.subr.mxu0 0.0
    %139 = vmatpush1.msra.mxu0 0.0
    %140 = vmatprep.subr.mxu0 0.0
    %141 = vmatpush1.msra.mxu0 0.0
    %142 = vmatprep.subr.mxu0 0.0
    %143 = vmatpush1.msra.mxu0 0.0
    %144 = vmatprep.subr.mxu0 0.0
    %145 = vmatpush1.msra.mxu0 0.0
    %146 = vmatprep.subr.mxu0 0.0
    %147 = vmatpush1.msra.mxu0 0.0
    %148 = vmatprep.subr.mxu0 0.0
    %149 = vmatpush1.msra.mxu0 0.0
    %150 = vmatprep.subr.mxu0 %v127
    %151 = vmatpush1.msra.mxu0 %v126
    %152 = vmatprep.subr.mxu0 %v125
    %153 = vmatpush1.msra.mxu0 %v124
    %154 = vmatprep.subr.mxu0 %v123
    %155 = vmatpush1.msra.mxu0 %v122
    %156 = vmatprep.subr.mxu0 %v121
    %157 = vmatpush1.msra.mxu0 %v120
    %158 = vmatprep.subr.mxu0 %v119
    %159 = vmatpush1.msra.mxu0 %v118
    %160 = vmatprep.subr.mxu0 0.0
    %161 = vmatpush2.msra.mxu0 0.0
    %162 = vmatprep.subr.mxu0 0.0
    %163 = vmatpush2.msra.mxu0 0.0
    %164 = vmatprep.subr.mxu0 0.0
    %165 = vmatpush2.msra.mxu0 0.0
    %166 = vmatprep.subr.mxu0 0.0
    %167 = vmatpush2.msra.mxu0 0.0
    %168 = vmatprep.subr.mxu0 0.0
    %169 = vmatpush2.msra.mxu0 0.0
    %170 = vmatprep.subr.mxu0 0.0
    %171 = vmatpush2.msra.mxu0 0.0
    %172 = vmatprep.subr.mxu0 0.0
    %173 = vmatpush2.msra.mxu0 0.0
    %174 = vmatprep.subr.mxu0 0.0
    %175 = vmatpush2.msra.mxu0 0.0
    %176 = vmatprep.subr.mxu0 0.0
    %177 = vmatpush2.msra.mxu0 0.0
    %178 = vmatprep.subr.mxu0 0.0
    %179 = vmatpush2.msra.mxu0 0.0
    %180 = vmatprep.subr.mxu0 0.0
    %181 = vmatpush2.msra.mxu0 0.0
    %182 = vmatprep.subr.mxu0 0.0
    %183 = vmatpush2.msra.mxu0 0.0
    %184 = vmatprep.subr.mxu0 0.0
    %185 = vmatpush2.msra.mxu0 0.0
    %186 = vmatprep.subr.mxu0 0.0
    %187 = vmatpush2.msra.mxu0 0.0
    %188 = vmatprep.subr.mxu0 0.0
    %189 = vmatpush2.msra.mxu0 0.0
    %190 = vmatprep.subr.mxu0 0.0
    %191 = vmatpush2.msra.mxu0 0.0
    %192 = vmatprep.mubr.f32.mxu0 0.0
    %193 = vmatmul.mubr.f32.gmra.mxu0 %v46
    %v194 = vpop.f32.mrf.mxu0
    %v195 = vadd.f32 0.0, %v194
    %v196 = vpop.f32.mrf.mxu0
    %v197 = vadd.f32 0.0, %v196
    %198 = vdwg.mxu0
    %199 = vst [vmem:[#allocation6] sm:$0xff] %v195
    %200 = vst [vmem:[#allocation6 + $0x8] sm:$0xff] %v197
    %202 = vrot.lane.b32.xlu0 %v115, 8
    %v203 = vpop.permute.xlu0 %202
    %vm205 = vcmask 326720
    %206 = vst.msk [vmem:[#allocation2] sm:$0xff] %vm205, %v203
    // Predicated region
    $region22: #{tpu_custom_call.1} parent=1 // pred_check
      _
    $region23: #{tpu_custom_call.1} parent=1 // pred_check_branch
      %208 = sbr.rel (0) target = $region25
    $region24: #{tpu_custom_call.1} parent=1 // pred_region
      %s210 = ssub.s32 256, 256
      %211 = vsyncadd [#allocation5], %s210
      %s213 = sshll.u32 [#allocation6], 4
      %s214 = int_to_ptr.vmem [resolvable:$true] %s213
      %216 = dma.vmem_to_hbm [thread:$0]  %s214, 256, %s3, [#allocation5]
    $region25: #{tpu_custom_call.1} parent=1 // pred_fallthru
      _
    // Predicated region
    $region26: #{tpu_custom_call.1} parent=1 // pred_check
      _
    $region27: #{tpu_custom_call.1} parent=1 // pred_check_branch
      %218 = sbr.rel (0) target = $region29
    $region28: #{tpu_custom_call.1} parent=1 // pred_region
      %219 = dma.done [#allocation5], 256
    $region29: #{tpu_custom_call.1} parent=1 // pred_fallthru
      _
    %220 = vsyncpa [#allocation4], 1
    %221 = vsyncpa [#allocation5], 1

</llo_original>
